<compile_context>
chip_gen: v6e
topology: v6e:2x2x1
jax: 0.10.0
libtpu: 0.0.40
codegen_flags: <defaults>
</compile_context>

<pallas_src>
import functools

import jax
import jax.numpy as jnp
import numpy as np
from jax.experimental import pallas as pl
from jax.experimental.pallas import tpu as pltpu


# ---------------------------------------------------------------------------
# Lane-rotation helper (single XLU rotate; replaces slice+slice+concat shifts)
# ---------------------------------------------------------------------------

def _probe_roll_direction():
    """pltpu.roll should match jnp.roll (result[i] = x[(i - shift) % n]).  The
    rotation direction is pinned down once at import time with a tiny kernel,
    since the reflect/zero boundary handling depends on it."""
    def k(x_ref, o_ref):
        o_ref[...] = pltpu.roll(x_ref[...], 1, axis=1)

    x = jnp.tile(jnp.arange(128, dtype=jnp.float32)[None, :], (8, 1))
    out = pl.pallas_call(
        k, out_shape=jax.ShapeDtypeStruct((8, 128), jnp.float32))(x)
    return bool(jax.device_get(out)[0, 0] == 127.0)


_ROLL_MATCHES_JNP = _probe_roll_direction()


def _shift_plus(x, d):
    """result[..., q] = x[..., (q + d) % n] as ONE XLU lane rotation.

    The wrapped boundary lanes (including wraps across batch boundaries) are
    fixed up by the callers with reflect / zero masks.
    """
    n = x.shape[-1]
    s = (-d) % n if _ROLL_MATCHES_JNP else d % n
    if s == 0:
        return x
    return pltpu.roll(x, s, axis=x.ndim - 1)


# ---------------------------------------------------------------------------
# Fused Pallas kernel
# ---------------------------------------------------------------------------

def _sam_fused_kernel(x_ref, wcat_ref, bcat_ref, g1_ref, be1_ref, w1_ref,
                      g2_ref, be2_ref, w2_ref, bf_ref, o_ref,
                      *, H, W, rel, K, eps):
    P = H * W
    N = x_ref.shape[-1]          # B * H * W (batch folded onto lanes)
    pad = K // 2
    f32 = jnp.float32

    def mm(w, v):
        # (O, C) @ (C, B*H*W): one lane-wide MXU GEMM, f32 accumulation.
        return jnp.dot(w, v, preferred_element_type=f32)

    def bn_relu(v, g, b):
        # torch BatchNorm2d training semantics: per-channel stats over
        # batch*H*W (= the lane axis), biased variance, then affine + ReLU.
        mean = jnp.mean(v, axis=1, keepdims=True)
        var = jnp.mean(jnp.square(v - mean), axis=1, keepdims=True)
        return jnp.maximum((v - mean) * (g * jax.lax.rsqrt(var + eps)) + b, 0.0)

    # ---- conv1 / conv2 / conv3 as one fused 1x1 conv (single GEMM) -----------
    y = mm(wcat_ref[...], x_ref[...]) + bcat_ref[...]       # (2*rel+out, N)
    x1 = y[:rel, :]
    x2 = y[rel:2 * rel, :]
    x3 = y[2 * rel:, :]

    # ---- lane-index boundary masks (per-image coords; lane = b*P + h*W + w) --
    lane = jax.lax.broadcasted_iota(jnp.int32, (1, N), 1)
    pix = lane % P
    col = pix % W
    row = pix // W
    w_lo, w_hi = col == 0, col == W - 1
    h_lo, h_hi = row == 0, row == H - 1
    # NOTE: a lane roll only wraps across an image/batch boundary at a w/h
    # edge, where one of these masks replaces the wrapped value anyway.

    # ---- conv_w stage 1: BN1 + ReLU + 1x1, streamed over 10 feature blocks ---
    # block 0 = x1; blocks 1..9 = reflect-pad unfold of x2 at position p.
    # (BN stats are per-channel, so per-block application is exact.)
    h1 = mm(w1_ref[0], bn_relu(x1, g1_ref[0], be1_ref[0]))          # (mid, N)

    x2_e = _shift_plus(x2, 1)        # value at (h, w+1)  (lane-wrapped)
    x2_w = _shift_plus(x2, -1)       # value at (h, w-1)  (lane-wrapped)
    xw = {
        -1: jnp.where(w_lo, x2_e, x2_w),   # reflect at w == 0     -> x2[h, 1]
        0: x2,
        1: jnp.where(w_hi, x2_w, x2_e),    # reflect at w == W - 1 -> x2[h, W-2]
    }
    for dw in (-1, 0, 1):
        base = xw[dw]
        dn = _shift_plus(base, W)          # value at (h+1, w)
        up = _shift_plus(base, -W)         # value at (h-1, w)
        rows3 = {
            -1: jnp.where(h_lo, dn, up),   # reflect at h == 0     -> row 1
            0: base,
            1: jnp.where(h_hi, up, dn),    # reflect at h == H - 1 -> row H-2
        }
        for dh in (-1, 0, 1):
            j = 1 + (dh + pad) * K + (dw + pad)
            h1 = h1 + mm(w1_ref[j], bn_relu(rows3[dh], g1_ref[j], be1_ref[j]))

    # ---- conv_w stage 2: BN2 + ReLU (final 1x1 folded into the loop below) ---
    a2 = bn_relu(h1, g2_ref[...], be2_ref[...])                     # (mid, N)

    # ---- local aggregation with zero padding (aggregation_zeropad) -----------
    # w2_ref[p]/bf_ref[p] are pre-tiled over share groups in the wrapper, so
    # each GEMM yields the per-output-channel weights directly (no concat).
    x3_e = _shift_plus(x3, 1)
    x3_w = _shift_plus(x3, -1)
    zw = {
        -1: jnp.where(w_lo, 0.0, x3_w),
        0: x3,
        1: jnp.where(w_hi, 0.0, x3_e),
    }
    acc = jnp.zeros(o_ref.shape, f32)
    for dh in (-1, 0, 1):
        for dw in (-1, 0, 1):
            v = zw[dw]
            if dh == 1:
                v = jnp.where(h_hi, 0.0, _shift_plus(v, W))
            elif dh == -1:
                v = jnp.where(h_lo, 0.0, _shift_plus(v, -W))
            p = (dh + pad) * K + (dw + pad)
            wfull = mm(w2_ref[p], a2) + bf_ref[p]                   # (out, N)
            acc = acc + wfull * v

    o_ref[...] = acc                 # (out, B*H*W): wide, lane-dense store


# ---------------------------------------------------------------------------
# Wrapper
# ---------------------------------------------------------------------------

def sam_forward(x, params, *, rel_planes, out_planes, share_planes, kernel_size=3):
    """Pallas forward for SAM.  x: (B, Cin, H, W) float32 NCHW."""
    B, Cin, H, W = x.shape
    K = kernel_size
    assert K == 3, "only the module-default kernel_size=3 is implemented"
    KK = K * K
    P = H * W
    N = B * P
    mid = out_planes // share_planes

    # conv1/conv2/conv3 fused into a single (2*rel+out, Cin) 1x1-conv weight.
    wcat = jnp.concatenate(
        [params["conv1_w"], params["conv2_w"], params["conv3_w"]], axis=0)
    bcat = jnp.concatenate(
        [params["conv1_b"], params["conv2_b"], params["conv3_b"]], axis=0
    ).reshape(-1, 1)

    # --- tiny host-side parameter re-blocking (so the kernel never shuffles
    #     activation data):
    # unfold channel order: torch is c*KK + p; the kernel streams rel-channel
    # blocks per position p -> gather BN1 / convw1 params per block.
    perm1 = np.concatenate([
        np.arange(rel_planes),
        rel_planes + np.array(
            [c * KK + p for p in range(KK) for c in range(rel_planes)]),
    ]).astype(np.int32)
    g1b = params["bn1_g"][perm1].reshape(KK + 1, rel_planes, 1)
    be1b = params["bn1_b"][perm1].reshape(KK + 1, rel_planes, 1)
    w1b = params["convw1_w"][:, perm1].reshape(
        mid, KK + 1, rel_planes).transpose(1, 0, 2)            # (KK+1, mid, rel)

    # final 1x1 of conv_w: torch output channel index is m*KK + p.  Pre-tile
    # over the share groups (output channel c uses weight channel c % mid) so
    # the per-position GEMM result is already (out_planes, N).
    rows = (np.arange(out_planes) % mid)[None, :] * KK + np.arange(KK)[:, None]
    w2b = params["convw2_w"][rows]                             # (KK, out, mid)
    bfb = params["convw2_b"][rows][..., None]                  # (KK, out, 1)

    # batch folded onto the lane axis: (Cin, B*H*W), lane = b*H*W + h*W + w.
    x2d = jnp.transpose(x, (1, 0, 2, 3)).reshape(Cin, N)

    args = (
        x2d, wcat, bcat,
        g1b, be1b, w1b,
        params["bn2_g"].reshape(-1, 1), params["bn2_b"].reshape(-1, 1),
        w2b, bfb,
    )

    def full_spec(shape):
        nd = len(shape)
        return pl.BlockSpec(shape, lambda i, nd=nd: (0,) * nd)

    kernel = functools.partial(
        _sam_fused_kernel, H=H, W=W, rel=rel_planes, K=K, eps=1e-5)

    out = pl.pallas_call(
        kernel,
        out_shape=jax.ShapeDtypeStruct((out_planes, N), jnp.float32),
        grid=(1,),
        in_specs=[full_spec(a.shape) for a in args],
        out_specs=full_spec((out_planes, N)),
        compiler_params=pltpu.CompilerParams(
            dimension_semantics=("arbitrary",)),
    )(*args)
    return jnp.transpose(out.reshape(out_planes, B, H, W), (1, 0, 2, 3))


# ---------------------------------------------------------------------------
# Pure-JAX reference of the torch module (for an in-script correctness check)
# ---------------------------------------------------------------------------

def sam_reference(x, params, *, rel_planes, out_planes, share_planes, kernel_size=3):
    B, _, H, W = x.shape
    K = kernel_size
    KK = K * K
    pad = K // 2
    wc = out_planes // share_planes
    hp = jax.lax.Precision.HIGHEST

    def conv1x1(v, w, b=None):
        y = jnp.einsum("oc,bchw->bohw", w, v, precision=hp)
        return y if b is None else y + b[None, :, None, None]

    def bn_relu(v, g, b, eps=1e-5):
        mean = v.mean(axis=(0, 2, 3), keepdims=True)
        var = ((v - mean) ** 2).mean(axis=(0, 2, 3), keepdims=True)
        vhat = (v - mean) / jnp.sqrt(var + eps)
        return jax.nn.relu(vhat * g[None, :, None, None] + b[None, :, None, None])

    x1 = conv1x1(x, params["conv1_w"], params["conv1_b"])
    x2 = conv1x1(x, params["conv2_w"], params["conv2_b"])
    x3 = conv1x1(x, params["conv3_w"], params["conv3_b"])

    x2p = jnp.pad(x2, ((0, 0), (0, 0), (pad, pad), (pad, pad)), mode="reflect")
    x2u = jnp.stack([x2p[:, :, kh:kh + H, kw:kw + W]
                     for kh in range(K) for kw in range(K)], axis=2)
    x2u = x2u.reshape(B, rel_planes * KK, H, W)

    h = bn_relu(jnp.concatenate([x1, x2u], axis=1), params["bn1_g"], params["bn1_b"])
    h = conv1x1(h, params["convw1_w"])
    h = bn_relu(h, params["bn2_g"], params["bn2_b"])
    wgt = conv1x1(h, params["convw2_w"], params["convw2_b"]).reshape(B, wc, KK, H, W)

    zp = (K - 1) // 2
    x3p = jnp.pad(x3, ((0, 0), (0, 0), (zp, zp), (zp, zp)))
    outs = []
    for c in range(out_planes):
        m = c % wc
        acc = jnp.zeros((B, H, W), jnp.float32)
        for kh in range(K):
            for kw in range(K):
                acc = acc + wgt[:, m, kh * K + kw] * x3p[:, c, kh:kh + H, kw:kw + W]
        outs.append(acc)
    return jnp.stack(outs, axis=1)


# ---------------------------------------------------------------------------
# Deterministic parameters + run
# ---------------------------------------------------------------------------

if __name__ == "__main__":
    B, in_planes, H, W = 2, 16, 16, 16
    rel_planes, out_planes, share_planes, K = 4, 8, 2, 3
    KK = K * K
    mid = out_planes // share_planes
    c_cat = rel_planes * (KK + 1)
    c_fin = KK * mid

    key = jax.random.PRNGKey(0)
    ks = jax.random.split(key, 16)
    x = jax.random.normal(ks[0], (B, in_planes, H, W), jnp.float32)

    params = {
        # conv1/conv2/conv3: Conv2d(in, *, 1) with bias (weights stored as (Cout, Cin))
        "conv1_w": 0.1 * jax.random.normal(ks[1], (rel_planes, in_planes), jnp.float32),
        "conv1_b": 0.1 * jax.random.normal(ks[2], (rel_planes,), jnp.float32),
        "conv2_w": 0.1 * jax.random.normal(ks[3], (rel_planes, in_planes), jnp.float32),
        "conv2_b": 0.1 * jax.random.normal(ks[4], (rel_planes,), jnp.float32),
        "conv3_w": 0.1 * jax.random.normal(ks[5], (out_planes, in_planes), jnp.float32),
        "conv3_b": 0.1 * jax.random.normal(ks[6], (out_planes,), jnp.float32),
        # conv_w: BN(rel*(K^2+1)) + ReLU + Conv(->mid, no bias) + BN(mid) + ReLU + Conv(->K^2*mid, bias)
        "bn1_g": 1.0 + 0.1 * jax.random.normal(ks[7], (c_cat,), jnp.float32),
        "bn1_b": 0.1 * jax.random.normal(ks[8], (c_cat,), jnp.float32),
        "convw1_w": 0.1 * jax.random.normal(ks[9], (mid, c_cat), jnp.float32),
        "bn2_g": 1.0 + 0.1 * jax.random.normal(ks[10], (mid,), jnp.float32),
        "bn2_b": 0.1 * jax.random.normal(ks[11], (mid,), jnp.float32),
        "convw2_w": 0.1 * jax.random.normal(ks[12], (c_fin, mid), jnp.float32),
        "convw2_b": 0.1 * jax.random.normal(ks[13], (c_fin,), jnp.float32),
    }

    cfg = dict(rel_planes=rel_planes, out_planes=out_planes,
               share_planes=share_planes, kernel_size=K)

    fwd = jax.jit(functools.partial(sam_forward, **cfg))
    out = fwd(x, params)
    jax.block_until_ready(out)

    assert out.shape == (B, out_planes, H, W), out.shape
    assert bool(jnp.all(jnp.isfinite(out)))

    # Correctness check against the pure-JAX/XLA reference of the torch forward.
    ref = jax.jit(functools.partial(sam_reference, **cfg))(x, params)
    jax.block_until_ready(ref)
    err = float(jnp.max(jnp.abs(out - ref)))
    assert err < 5e-3, f"kernel/reference mismatch: max abs err = {err}"

    print("KERNEL_OK")
</pallas_src>

<mosaic_0001>
module attributes {stable_mosaic.version = 11 : i64} {
  func.func @k(%arg0: memref<8x128xf32, #tpu.memory_space<vmem>>, %arg1: memref<8x128xf32, #tpu.memory_space<vmem>>) attributes {dimension_semantics = [], scalar_prefetch = 0 : i64, scratch_operands = 0 : i64, tpu.core_type = #tpu.core_type<tc>} {
    %c0 = arith.constant 0 : index
    %c0_0 = arith.constant 0 : index
    %0 = vector.load %arg0[%c0, %c0_0] : memref<8x128xf32, #tpu.memory_space<vmem>>, vector<8x128xf32>
    %c1_i32 = arith.constant 1 : i32
    %1 = tpu.dynamic_rotate %0 by %c1_i32 dim 1 : vector<8x128xf32>, i32 -> vector<8x128xf32>
    %c0_1 = arith.constant 0 : index
    %c0_2 = arith.constant 0 : index
    %2 = vector.load %arg1[%c0_1, %c0_2] : memref<8x128xf32, #tpu.memory_space<vmem>>, vector<8x128xf32>
    tpu.vector_store %arg1[%c0_1, %c0_2], %1 {strides = array<i32>} : memref<8x128xf32, #tpu.memory_space<vmem>>, vector<8x128xf32>,
    return
  }
}

</mosaic_0001>

<llo_original>
// kernel: tpu_custom_call.1
$region0: #{tpu_custom_call.1}
  #allocation0 [shape = 'u32[]', space=smem, size = 0x4, offset = 0x4, fixed_abs, tag = 'smem constant byte address 0x4 - core index']
  #allocation1 [shape = 'u32[144,128]{1,0:T(1,128)}', space=vmem, size = 0x12000, scoped, tag = 'internal scratch']
  %s0 = inlined_call_operand.hbm [shape: f32[8,128], index: 0, kind: input, shape index: {}]
  %s1 = inlined_call_operand.hbm [shape: f32[8,128], index: 1, kind: output, shape index: {}]
  %s2 = sld [smem:[#allocation0]]
  $region18: #{tpu_custom_call.1} parent=0
    _
  %s4 = ssub.s32 1, %s2
  %s5 = scalar_select 0, %s4, %s2
  $region1: #{tpu_custom_call.1} parent=0
    #allocation2 [shape = 'u8[4096]{0}', space=vmem, size = 0x1000, scoped, tag = 'input window, operand 0, single buffered']
    #allocation3 [shape = 's32[1]{0}', space=sflag, size = 0x4, scoped, tag = 'scoped memory for tpu_custom_call.1']
    #allocation4 [shape = 's32[1]{0}', space=sflag, size = 0x4, scoped, tag = 'scoped memory for tpu_custom_call.1']
    #allocation5 [shape = 'u8[4096]{0}', space=vmem, size = 0x1000, scoped, tag = 'output window, operand 0, single buffered']
    %6 = vsyncpa [#allocation3], 0
    %7 = vsyncpa [#allocation4], 0
    // Predicated region
    $region2: #{tpu_custom_call.1} parent=1 // pred_check
      _
    $region3: #{tpu_custom_call.1} parent=1 // pred_check_branch
      %9 = sbr.rel (0) target = $region5
    $region4: #{tpu_custom_call.1} parent=1 // pred_region
      %s11 = ssub.s32 128, 128
      %12 = vsyncadd [#allocation3], %s11
      %s14 = sshll.u32 [#allocation2], 4
      %s15 = int_to_ptr.vmem [resolvable:$true] %s14
      %17 = dma.hbm_to_vmem [thread:$0]  %s0, 128, %s15, [#allocation3]
    $region5: #{tpu_custom_call.1} parent=1 // pred_fallthru
      _
    // Predicated region
    $region6: #{tpu_custom_call.1} parent=1 // pred_check
      _
    $region7: #{tpu_custom_call.1} parent=1 // pred_check_branch
      %19 = sbr.rel (0) target = $region9
    $region8: #{tpu_custom_call.1} parent=1 // pred_region
      %20 = dma.done [#allocation3], 128
    $region9: #{tpu_custom_call.1} parent=1 // pred_fallthru
      _
    %v21 = vld [vmem:[#allocation2] sm:$0xff]
    %22 = vrot.lane.b32.xlu0 %v21, 1
    %v23 = vpop.permute.xlu0 %22
    %24 = vst [vmem:[#allocation5] sm:$0xff] %v23
    // Predicated region
    $region10: #{tpu_custom_call.1} parent=1 // pred_check
      _
    $region11: #{tpu_custom_call.1} parent=1 // pred_check_branch
      %26 = sbr.rel (0) target = $region13
    $region12: #{tpu_custom_call.1} parent=1 // pred_region
      %s28 = ssub.s32 128, 128
      %29 = vsyncadd [#allocation4], %s28
      %s31 = sshll.u32 [#allocation5], 4
      %s32 = int_to_ptr.vmem [resolvable:$true] %s31
      %34 = dma.vmem_to_hbm [thread:$0]  %s32, 128, %s1, [#allocation4]
    $region13: #{tpu_custom_call.1} parent=1 // pred_fallthru
      _
    // Predicated region
    $region14: #{tpu_custom_call.1} parent=1 // pred_check
      _
    $region15: #{tpu_custom_call.1} parent=1 // pred_check_branch
      %36 = sbr.rel (0) target = $region17
    $region16: #{tpu_custom_call.1} parent=1 // pred_region
      %37 = dma.done [#allocation4], 128
    $region17: #{tpu_custom_call.1} parent=1 // pred_fallthru
      _
    %38 = vsyncpa [#allocation3], 1
    %39 = vsyncpa [#allocation4], 1

</llo_original>
